<compile_context>
chip_gen: v7x
topology: tpu7x:2x2x1
jax: 0.10.0
libtpu: 0.0.40
codegen_flags: <defaults>
</compile_context>

<pallas_src>
import math

import numpy as np
import jax
import jax.numpy as jnp
from jax.experimental import pallas as pl
from jax.experimental.pallas import tpu as pltpu


def _logit_adjust_kernel(x_ref, prior_ref, o_ref):
    """One tile: o = x + prior, prior broadcast over rows.

    x_ref     : VMEM (br, bc)  activation tile (any dtype)
    prior_ref : VMEM (1, bc)   priors slice (output dtype), same block reused over rows
    o_ref     : VMEM (br, bc)  output tile (promoted dtype)
    """
    o_ref[...] = x_ref[...].astype(o_ref.dtype) + prior_ref[...]


def _sublane(*dtypes):
    """Sublane alignment multiple for the given dtypes (8 f32, 16 bf16, 32 int8/fp8)."""
    s = 8
    for dt in dtypes:
        s = max(s, 32 // max(1, np.dtype(dt).itemsize))
    return s


def _is_multi_tensorcore_chip():
    """Best-effort detection of a 2-TensorCore chip (v7x). Falls back to False."""
    try:
        kind = jax.devices()[0].device_kind.lower()
    except Exception:
        return False
    return "v7" in kind


def logit_adjustment(x, class_priors, *,
                     target_tile_bytes=2 * 1024 * 1024,
                     min_kernel_bytes=512 * 1024,
                     donate_input=False):
    """Forward of LogitAdjustmentLayer: x + class_priors over the last dim."""
    priors = jnp.asarray(class_priors)
    out_dtype = jnp.result_type(x.dtype, priors.dtype)   # torch-style type promotion
    orig_shape = x.shape
    C = int(orig_shape[-1])

    # Tiny inputs: plain XLA add is faster (and fuses with neighbours).
    total_bytes = x.size * (np.dtype(x.dtype).itemsize + np.dtype(out_dtype).itemsize)
    if x.size == 0 or total_bytes < min_kernel_bytes:
        return (x + priors.reshape((1,) * (x.ndim - 1) + (C,))).astype(out_dtype)

    x2 = x.reshape(-1, C)
    B = x2.shape[0]
    priors_row = priors.reshape(1, C).astype(out_dtype)

    # ---- Lane packing: fold k rows into one so the class axis fills 128-lane vregs.
    k = 128 // math.gcd(C, 128)        # minimal k with (k*C) % 128 == 0 (power of two)
    if k > 1:
        k = math.gcd(B, k)             # keep only the part that divides B exactly
    if k > 1:
        x2 = x2.reshape(B // k, k * C)            # contiguous reshape, no data movement
        priors_row = jnp.tile(priors_row, (1, k))  # tiny, done once in the wrapper
    R, W = x2.shape

    in_size = np.dtype(x2.dtype).itemsize
    out_size = np.dtype(out_dtype).itemsize
    sub = _sublane(x2.dtype, out_dtype)

    # ---- Column (lane) blocking: only when W is 128-aligned; otherwise full row
    # (BlockSpec "equal to full array dim" exception handles non-aligned W).
    if W % 128 == 0:
        max_cols = max(128, (target_tile_bytes // (sub * max(in_size, out_size))) // 128 * 128)
        bc = min(W, max_cols)
    else:
        bc = W

    # ---- Row tile sized by bytes (~target_tile_bytes per buffer), sublane-aligned.
    bytes_per_block_row = bc * max(in_size, out_size)
    br = max(sub, target_tile_bytes // bytes_per_block_row)

    # v7x only: keep >= ~4 row blocks so both TensorCores get balanced work.
    if _is_multi_tensorcore_chip() and R > 4 * sub:
        br = min(br, max(sub, pl.cdiv(pl.cdiv(R, 4), sub) * sub))

    if br >= R:
        br = R                                     # full-extent block, no alignment needed
    else:
        br = max(sub, (br // sub) * sub)

    # Double-buffered in + out tiles + priors buffers, plus headroom for internal scratch.
    vmem_needed = 2 * br * bc * (in_size + out_size) + 2 * bc * out_size
    if vmem_needed > 40 * 1024 * 1024:
        # Degenerate case (enormous non-128-aligned class dim): let XLA handle it.
        return (x + priors.reshape((1,) * (x.ndim - 1) + (C,))).astype(out_dtype)
    vmem_limit = int(min(max(vmem_needed * 5 // 4 + (2 << 20), 16 << 20), 48 << 20))

    grid = (pl.cdiv(R, br), pl.cdiv(W, bc))

    alias = {}
    if donate_input and x2.dtype == out_dtype:
        # Elementwise overwrite is alias-safe; reuses x's HBM buffer when it is dead
        # after this op (under jit).  Eagerly, XLA copies if x is still referenced.
        alias = {0: 0}

    out = pl.pallas_call(
        _logit_adjust_kernel,
        out_shape=jax.ShapeDtypeStruct((R, W), out_dtype),
        grid_spec=pltpu.PrefetchScalarGridSpec(
            num_scalar_prefetch=0,
            grid=grid,
            in_specs=[
                pl.BlockSpec((br, bc), lambda i, j: (i, j)),   # activations
                pl.BlockSpec((1, bc), lambda i, j: (0, j)),    # priors, reused over rows
            ],
            out_specs=pl.BlockSpec((br, bc), lambda i, j: (i, j)),
        ),
        compiler_params=pltpu.CompilerParams(
            dimension_semantics=("parallel", "parallel"),
            vmem_limit_bytes=vmem_limit,
        ),
        input_output_aliases=alias,
    )(x2, priors_row)

    return out.reshape(orig_shape)


if __name__ == "__main__":
    key = jax.random.PRNGKey(0)
    k1, k2, k3, k4, k5, k6 = jax.random.split(key, 6)

    # 1) Tiny logits -> plain-add fast path (no pallas_call).
    x1 = jax.random.normal(k1, (16, 10), dtype=jnp.float32)
    p1 = jnp.log(jax.nn.softmax(jax.random.normal(k2, (10,), jnp.float32)))
    y1 = logit_adjustment(x1, p1)
    jax.block_until_ready(y1)
    assert jnp.allclose(y1, x1 + p1, atol=1e-6, rtol=1e-6), "tiny-path mismatch"

    # 2) Lane-packed kernel path: C=10, B=256 -> packed to (4, 640) (640 = 5*128 lanes).
    x2 = jax.random.normal(k3, (256, 10), dtype=jnp.float32)
    y2 = logit_adjustment(x2, p1, min_kernel_bytes=0)
    jax.block_until_ready(y2)
    assert jnp.allclose(y2, x2 + p1, atol=1e-6, rtol=1e-6), "lane-packed mismatch"

    # 3) 128-aligned C with ragged last row block + donated input (small tiles forced).
    x3 = jax.random.normal(k4, (2, 37, 128), dtype=jnp.float32)
    p3 = jnp.linspace(-1.0, 1.0, 128, dtype=jnp.float32)
    ref3 = x3 + p3
    y3 = logit_adjustment(x3, p3, min_kernel_bytes=0, target_tile_bytes=4096,
                          donate_input=True)
    jax.block_until_ready(y3)
    assert jnp.allclose(y3, ref3, atol=1e-6, rtol=1e-6), "ragged-row mismatch"

    # 4) Dtype promotion: bf16 activations + f32 priors -> f32 add/output (torch semantics).
    x4 = jax.random.normal(k5, (64, 96), dtype=jnp.bfloat16)
    p4 = jnp.log(jax.nn.softmax(jax.random.normal(k6, (96,), jnp.float32)))
    y4 = logit_adjustment(x4, p4, min_kernel_bytes=0)
    jax.block_until_ready(y4)
    assert y4.dtype == jnp.float32, "promotion dtype mismatch"
    assert jnp.allclose(y4, x4.astype(jnp.float32) + p4, atol=1e-6, rtol=1e-6), \
        "bf16/f32 promotion mismatch"

    # 5) Lane-sparse fallback (odd B, no row-pack divides) with ragged row blocks.
    x5 = jax.random.normal(k1, (253, 10), dtype=jnp.float32)
    y5 = logit_adjustment(x5, p1, min_kernel_bytes=0, target_tile_bytes=1024)
    jax.block_until_ready(y5)
    assert jnp.allclose(y5, x5 + p1, atol=1e-6, rtol=1e-6), "lane-sparse mismatch"

    print("KERNEL_OK")
</pallas_src>

<mosaic_0001>
module attributes {stable_mosaic.version = 11 : i64} {
  func.func @_logit_adjust_kernel(%arg0: i32, %arg1: i32, %arg2: memref<4x640xf32, #tpu.memory_space<vmem>>, %arg3: memref<1x640xf32, #tpu.memory_space<vmem>>, %arg4: memref<4x640xf32, #tpu.memory_space<vmem>>) attributes {dimension_semantics = [#tpu.dimension_semantics<parallel>, #tpu.dimension_semantics<parallel>], iteration_bounds = array<i64: 1, 1>, scalar_prefetch = 0 : i64, scratch_operands = 0 : i64, tpu.core_type = #tpu.core_type<tc>, window_params = [{transform_indices = @transform_0, window_bounds = array<i64: 4, 640>}, {transform_indices = @transform_1, window_bounds = array<i64: 1, 640>}, {transform_indices = @transform_2, window_bounds = array<i64: 4, 640>}]} {
    %c0 = arith.constant 0 : index
    %c0_0 = arith.constant 0 : index
    %0 = vector.load %arg2[%c0, %c0_0] : memref<4x640xf32, #tpu.memory_space<vmem>>, vector<4x640xf32>
    %c0_1 = arith.constant 0 : index
    %c0_2 = arith.constant 0 : index
    %1 = vector.load %arg3[%c0_1, %c0_2] : memref<1x640xf32, #tpu.memory_space<vmem>>, vector<1x640xf32>
    %2 = vector.broadcast %1 : vector<1x640xf32> to vector<4x640xf32>
    %3 = arith.addf %0, %2 : vector<4x640xf32>
    %c0_3 = arith.constant 0 : index
    %c0_4 = arith.constant 0 : index
    %4 = vector.load %arg4[%c0_3, %c0_4] : memref<4x640xf32, #tpu.memory_space<vmem>>, vector<4x640xf32>
    tpu.vector_store %arg4[%c0_3, %c0_4], %3 {strides = array<i32>} : memref<4x640xf32, #tpu.memory_space<vmem>>, vector<4x640xf32>,
    return
  }
  func.func @transform_0(%arg0: i32, %arg1: i32) -> (i32, i32) {
    %c0_i32 = arith.constant 0 : i32
    return %arg0, %arg1 : i32, i32
  }
  func.func @transform_1(%arg0: i32, %arg1: i32) -> (i32, i32) {
    %c0_i32 = arith.constant 0 : i32
    %c0_i32_0 = arith.constant 0 : i32
    return %c0_i32, %arg1 : i32, i32
  }
  func.func @transform_2(%arg0: i32, %arg1: i32) -> (i32, i32) {
    %c0_i32 = arith.constant 0 : i32
    return %arg0, %arg1 : i32, i32
  }
}

</mosaic_0001>

<llo_original>
// kernel: tpu_custom_call.1
$region0: #{tpu_custom_call.1}
  #allocation0 [shape = 'u32[]', space=smem, size = 0x4, offset = 0x4, fixed_abs, tag = 'smem constant byte address 0x4 - core index']
  #allocation1 [shape = 'u32[144,128]{1,0:T(1,128)}', space=vmem, size = 0x12000, scoped, tag = 'internal scratch']
  %s0 = inlined_call_operand.hbm [shape: f32[4,640], index: 0, kind: input, shape index: {}]
  %s1 = inlined_call_operand.hbm [shape: f32[1,640], index: 1, kind: input, shape index: {}]
  %s2 = inlined_call_operand.hbm [shape: f32[4,640], index: 2, kind: output, shape index: {}]
  %s3 = sld [smem:[#allocation0]]
  $region26: #{tpu_custom_call.1} parent=0
    _
  %s5 = ssub.s32 1, %s3
  %s6 = scalar_select 0, %s5, %s3
  $region1: #{tpu_custom_call.1} parent=0
    #allocation2 [shape = 'u8[10240]{0}', space=vmem, size = 0x2800, scoped, tag = 'input window, operand 0, single buffered']
    #allocation3 [shape = 's32[1]{0}', space=sflag, size = 0x4, scoped, tag = 'scoped memory for tpu_custom_call.1']
    #allocation4 [shape = 's32[1]{0}', space=sflag, size = 0x4, scoped, tag = 'scoped memory for tpu_custom_call.1']
    #allocation5 [shape = 'u8[2560]{0}', space=vmem, size = 0xc00, scoped, tag = 'input window, operand 1, single buffered']
    #allocation6 [shape = 's32[1]{0}', space=sflag, size = 0x4, scoped, tag = 'scoped memory for tpu_custom_call.1']
    #allocation7 [shape = 'u8[10240]{0}', space=vmem, size = 0x2800, scoped, tag = 'output window, operand 0, single buffered']
    %7 = vsyncpa [#allocation3], 0
    %8 = vsyncpa [#allocation6], 0
    %9 = vsyncpa [#allocation4], 0
    // Predicated region
    $region2: #{tpu_custom_call.1} parent=1 // pred_check
      _
    $region3: #{tpu_custom_call.1} parent=1 // pred_check_branch
      %11 = sbr.rel (0) target = $region5
    $region4: #{tpu_custom_call.1} parent=1 // pred_region
      %s13 = ssub.s32 320, 320
      %14 = vsyncadd [#allocation3], %s13
      %s16 = sshll.u32 [#allocation2], 4
      %s17 = int_to_ptr.vmem [resolvable:$true] %s16
      %19 = dma.hbm_to_vmem [thread:$0]  %s0, 320, %s17, [#allocation3]
    $region5: #{tpu_custom_call.1} parent=1 // pred_fallthru
      _
    // Predicated region
    $region6: #{tpu_custom_call.1} parent=1 // pred_check
      _
    $region7: #{tpu_custom_call.1} parent=1 // pred_check_branch
      %21 = sbr.rel (0) target = $region9
    $region8: #{tpu_custom_call.1} parent=1 // pred_region
      %s23 = ssub.s32 80, 80
      %24 = vsyncadd [#allocation6], %s23
      %s26 = sshll.u32 [#allocation5], 4
      %s27 = int_to_ptr.vmem [resolvable:$true] %s26
      %29 = dma.hbm_to_vmem [thread:$0]  %s1, 80, %s27, [#allocation6]
    $region9: #{tpu_custom_call.1} parent=1 // pred_fallthru
      _
    // Predicated region
    $region10: #{tpu_custom_call.1} parent=1 // pred_check
      _
    $region11: #{tpu_custom_call.1} parent=1 // pred_check_branch
      %31 = sbr.rel (0) target = $region13
    $region12: #{tpu_custom_call.1} parent=1 // pred_region
      %32 = dma.done [#allocation3], 320
    $region13: #{tpu_custom_call.1} parent=1 // pred_fallthru
      _
    // Predicated region
    $region14: #{tpu_custom_call.1} parent=1 // pred_check
      _
    $region15: #{tpu_custom_call.1} parent=1 // pred_check_branch
      %34 = sbr.rel (0) target = $region17
    $region16: #{tpu_custom_call.1} parent=1 // pred_region
      %35 = dma.done [#allocation6], 80
    $region17: #{tpu_custom_call.1} parent=1 // pred_fallthru
      _
    %v36 = vld [vmem:[#allocation2] sm:$0xff]
    %v37 = vld [vmem:[#allocation2 + $0x8] sm:$0xff]
    %v38 = vld [vmem:[#allocation2 + $0x10] sm:$0xf]
    %v39 = vld [vmem:[#allocation5] sm:$0x1f]
    %v41 = vlaneseq
    %v42 = vshrl.u32 %v41, 7
    %v43 = vsub.s32 0, %v42
    %v44 = vrot.slane %v39, %v43
    %v45 = vlaneseq
    %v46 = vshrl.u32 %v45, 7
    %v47 = vsub.s32 1, %v46
    %v48 = vrot.slane %v39, %v47
    %v49 = vlaneseq
    %v50 = vshrl.u32 %v49, 7
    %v51 = vsub.s32 2, %v50
    %v52 = vrot.slane %v39, %v51
    %v53 = vlaneseq
    %v54 = vshrl.u32 %v53, 7
    %v55 = vsub.s32 3, %v54
    %v56 = vrot.slane %v39, %v55
    %v57 = vlaneseq
    %v58 = vshrl.u32 %v57, 7
    %v59 = vsub.s32 4, %v58
    %v60 = vrot.slane %v39, %v59
    %v62 = vcombine.low %v44, %v48
    %v63 = vcombine.low %v52, %v56
    %v66 = vadd.f32 %v36, %v62
    %v67 = vadd.f32 %v37, %v63
    %v68 = vadd.f32 %v38, %v60
    %69 = vst [vmem:[#allocation7] sm:$0xff] %v66
    %70 = vst [vmem:[#allocation7 + $0x8] sm:$0xff] %v67
    %71 = vst [vmem:[#allocation7 + $0x10] sm:$0xf] %v68
    // Predicated region
    $region18: #{tpu_custom_call.1} parent=1 // pred_check
      _
    $region19: #{tpu_custom_call.1} parent=1 // pred_check_branch
      %73 = sbr.rel (0) target = $region21
    $region20: #{tpu_custom_call.1} parent=1 // pred_region
      %s75 = ssub.s32 320, 320
      %76 = vsyncadd [#allocation4], %s75
      %s78 = sshll.u32 [#allocation7], 4
      %s79 = int_to_ptr.vmem [resolvable:$true] %s78
      %81 = dma.vmem_to_hbm [thread:$0]  %s79, 320, %s2, [#allocation4]
    $region21: #{tpu_custom_call.1} parent=1 // pred_fallthru
      _
    // Predicated region
    $region22: #{tpu_custom_call.1} parent=1 // pred_check
      _
    $region23: #{tpu_custom_call.1} parent=1 // pred_check_branch
      %83 = sbr.rel (0) target = $region25
    $region24: #{tpu_custom_call.1} parent=1 // pred_region
      %84 = dma.done [#allocation4], 320
    $region25: #{tpu_custom_call.1} parent=1 // pred_fallthru
      _
    %85 = vsyncpa [#allocation3], 1
    %86 = vsyncpa [#allocation6], 1
    %87 = vsyncpa [#allocation4], 1

</llo_original>
